<compile_context>
chip_gen: v6e
topology: v6e:2x2x1
jax: 0.10.0
libtpu: 0.0.40
codegen_flags: <defaults>
</compile_context>

<pallas_src>
from functools import reduce

import jax
import jax.numpy as jnp
from jax.experimental import pallas as pl
from jax.experimental.pallas import tpu as pltpu


# ------------------------------ Pallas kernels ----------------------------- #

_VMEM_TILE_BUDGET = 32 * 1024 * 1024   # bytes for all (double-buffered) tiles
_VMEM_LIMIT_BYTES = 48 * 1024 * 1024   # explicit scoped-VMEM limit (v5e/v6e/v7x safe)


def _nary_add_kernel(*refs):
    """Fused elementwise sum of N input tiles into one output tile (VPU)."""
    *in_refs, o_ref = refs
    acc = in_refs[0][...]
    for r in in_refs[1:]:
        acc = acc + r[...]
    o_ref[...] = acc


def _pallas_nary_add(*xs):
    """Fused elementwise sum of N same-shape/dtype 2-D arrays in one kernel."""
    x0 = xs[0]
    for x in xs[1:]:
        assert x.shape == x0.shape and x.dtype == x0.dtype
    R, C = x0.shape
    assert R % 8 == 0 and C % 128 == 0, "shape must align to (8, 128) tiles"

    itemsize = jnp.dtype(x0.dtype).itemsize
    n_buf = len(xs) + 1                      # N inputs + 1 output
    full_bytes = 2 * n_buf * R * C * itemsize  # double-buffered whole array

    if full_bytes <= _VMEM_TILE_BUDGET:
        # Small array: single block, no grid -> no per-step overhead at all.
        return pl.pallas_call(
            _nary_add_kernel,
            out_shape=jax.ShapeDtypeStruct((R, C), x0.dtype),
            compiler_params=pltpu.CompilerParams(
                vmem_limit_bytes=_VMEM_LIMIT_BYTES),
        )(*xs)

    # Large array: tile rows only; keep the full lane-dense column extent.
    max_rows = _VMEM_TILE_BUDGET // (2 * n_buf * C * itemsize)
    tile_r = max(8, (max_rows // 8) * 8)
    tile_r = min(tile_r, R)
    grid = (pl.cdiv(R, tile_r),)
    spec = pl.BlockSpec((tile_r, C), lambda i: (i, 0))
    return pl.pallas_call(
        _nary_add_kernel,
        out_shape=jax.ShapeDtypeStruct((R, C), x0.dtype),
        grid=grid,
        in_specs=[spec] * len(xs),
        out_specs=spec,
        compiler_params=pltpu.CompilerParams(
            dimension_semantics=("parallel",),
            vmem_limit_bytes=_VMEM_LIMIT_BYTES),
    )(*xs)


# jit so repeated forward() calls don't pay Python trace/dispatch overhead.
_fused_add = jax.jit(_pallas_nary_add)


# ----------------------------- MockModule (JAX) ----------------------------- #

class MockModulePallas:
    """JAX/Pallas port of MockModule.

    Default op (a + b): the whole reduce chain is fused into a single variadic
    Pallas kernel. A user-supplied `op` falls back to the pairwise reduce.
    """

    def __init__(self, op=None):
        self.op = op          # None -> fused n-ary Pallas add
        self.data = None

    def forward(self, *inputs):
        if inputs:
            if self.data is not None:
                operands = (self.data, *inputs)
            elif len(inputs) > 1:
                operands = inputs
            else:
                self.data = inputs[0]
                return self.data

            if self.op is None:
                # Fused: one kernel, one HBM write, no intermediates.
                # TODO(synk): input_output_aliases={0: 0} on the accumulate
                # path was skipped — aliasing would mutate earlier returned
                # references to `data`, changing the module's semantics.
                self.data = _fused_add(*operands)
            else:
                self.data = reduce(self.op, operands)
        return self.data

    __call__ = forward


# ---------------------------------- main ------------------------------------ #

if __name__ == "__main__":
    key = jax.random.PRNGKey(0)
    k1, k2, k3 = jax.random.split(key, 3)

    # Small shape consistent with the module's generic elementwise forward.
    shape = (16, 256)  # rows x cols, aligns to (8, 128)
    x1 = jax.random.normal(k1, shape, dtype=jnp.float32)
    x2 = jax.random.normal(k2, shape, dtype=jnp.float32)
    x3 = jax.random.normal(k3, shape, dtype=jnp.float32)

    mod = MockModulePallas()

    # Call 1: multiple inputs, no stored data -> reduce(op, (x1, x2)) = x1 + x2
    out1 = mod(x1, x2)
    # Call 2: stored data present -> reduce(op, (data, x3)) = (x1 + x2) + x3
    out2 = mod(x3)
    # Call 3: no inputs -> returns stored data unchanged
    out3 = mod()

    out1 = jax.block_until_ready(out1)
    out2 = jax.block_until_ready(out2)
    out3 = jax.block_until_ready(out3)

    ref1 = x1 + x2
    ref2 = (x1 + x2) + x3
    assert jnp.allclose(out1, ref1, atol=1e-6), "call-1 mismatch"
    assert jnp.allclose(out2, ref2, atol=1e-6), "call-2 mismatch"
    assert jnp.allclose(out3, ref2, atol=1e-6), "call-3 (no-input) mismatch"

    # Fresh module, 3 inputs in a single call -> exercises the 3-ary fused kernel.
    mod2 = MockModulePallas()
    out4 = jax.block_until_ready(mod2(x1, x2, x3))
    assert jnp.allclose(out4, ref2, atol=1e-6), "fused 3-input mismatch"

    print("KERNEL_OK")
</pallas_src>

<mosaic_0001>
module attributes {stable_mosaic.version = 11 : i64} {
  func.func @_nary_add_kernel(%arg0: memref<16x256xf32, #tpu.memory_space<vmem>>, %arg1: memref<16x256xf32, #tpu.memory_space<vmem>>, %arg2: memref<16x256xf32, #tpu.memory_space<vmem>>) attributes {dimension_semantics = [], scalar_prefetch = 0 : i64, scratch_operands = 0 : i64, tpu.core_type = #tpu.core_type<tc>} {
    %c0 = arith.constant 0 : index
    %c0_0 = arith.constant 0 : index
    %0 = vector.load %arg0[%c0, %c0_0] : memref<16x256xf32, #tpu.memory_space<vmem>>, vector<16x256xf32>
    %c0_1 = arith.constant 0 : index
    %c0_2 = arith.constant 0 : index
    %1 = vector.load %arg1[%c0_1, %c0_2] : memref<16x256xf32, #tpu.memory_space<vmem>>, vector<16x256xf32>
    %2 = arith.addf %0, %1 : vector<16x256xf32>
    %c0_3 = arith.constant 0 : index
    %c0_4 = arith.constant 0 : index
    %3 = vector.load %arg2[%c0_3, %c0_4] : memref<16x256xf32, #tpu.memory_space<vmem>>, vector<16x256xf32>
    tpu.vector_store %arg2[%c0_3, %c0_4], %2 {strides = array<i32>} : memref<16x256xf32, #tpu.memory_space<vmem>>, vector<16x256xf32>,
    return
  }
}

</mosaic_0001>

<llo_original>
// kernel: _pallas_nary_add.1
$region0: #{_pallas_nary_add.1}
  #allocation0 [shape = 'u32[]', space=smem, size = 0x4, offset = 0x4, fixed_abs, tag = 'smem constant byte address 0x4 - core index']
  #allocation1 [shape = 'u32[144,128]{1,0:T(1,128)}', space=vmem, size = 0x12000, scoped, tag = 'internal scratch']
  %s0 = inlined_call_operand.hbm [shape: f32[16,256], index: 0, kind: input, shape index: {}]
  %s1 = inlined_call_operand.hbm [shape: f32[16,256], index: 1, kind: input, shape index: {}]
  %s2 = inlined_call_operand.hbm [shape: f32[16,256], index: 2, kind: output, shape index: {}]
  %s3 = sld [smem:[#allocation0]]
  $region26: #{_pallas_nary_add.1} parent=0
    _
  %s5 = ssub.s32 1, %s3
  %s6 = scalar_select 0, %s5, %s3
  $region1: #{_pallas_nary_add.1} parent=0
    #allocation2 [shape = 'u8[16384]{0}', space=vmem, size = 0x4000, scoped, tag = 'input window, operand 0, single buffered']
    #allocation3 [shape = 's32[1]{0}', space=sflag, size = 0x4, scoped, tag = 'scoped memory for _pallas_nary_add.1']
    #allocation4 [shape = 's32[1]{0}', space=sflag, size = 0x4, scoped, tag = 'scoped memory for _pallas_nary_add.1']
    #allocation5 [shape = 'u8[16384]{0}', space=vmem, size = 0x4000, scoped, tag = 'input window, operand 1, single buffered']
    #allocation6 [shape = 's32[1]{0}', space=sflag, size = 0x4, scoped, tag = 'scoped memory for _pallas_nary_add.1']
    #allocation7 [shape = 'u8[16384]{0}', space=vmem, size = 0x4000, scoped, tag = 'output window, operand 0, single buffered']
    %7 = vsyncpa [#allocation3], 0
    %8 = vsyncpa [#allocation6], 0
    %9 = vsyncpa [#allocation4], 0
    // Predicated region
    $region2: #{_pallas_nary_add.1} parent=1 // pred_check
      _
    $region3: #{_pallas_nary_add.1} parent=1 // pred_check_branch
      %11 = sbr.rel (0) target = $region5
    $region4: #{_pallas_nary_add.1} parent=1 // pred_region
      %s13 = ssub.s32 512, 512
      %14 = vsyncadd [#allocation3], %s13
      %s15 = sshll.u32 [#allocation2], 4
      %s16 = int_to_ptr.vmem [resolvable:$true] %s15
      %21 = dma.hbm_to_vmem [thread:$0]  %s0, 512, %s16, [#allocation3], 256, 256, 16
    $region5: #{_pallas_nary_add.1} parent=1 // pred_fallthru
      _
    // Predicated region
    $region6: #{_pallas_nary_add.1} parent=1 // pred_check
      _
    $region7: #{_pallas_nary_add.1} parent=1 // pred_check_branch
      %23 = sbr.rel (0) target = $region9
    $region8: #{_pallas_nary_add.1} parent=1 // pred_region
      %s25 = ssub.s32 512, 512
      %26 = vsyncadd [#allocation6], %s25
      %s27 = sshll.u32 [#allocation5], 4
      %s28 = int_to_ptr.vmem [resolvable:$true] %s27
      %33 = dma.hbm_to_vmem [thread:$0]  %s1, 512, %s28, [#allocation6], 256, 256, 16
    $region9: #{_pallas_nary_add.1} parent=1 // pred_fallthru
      _
    // Predicated region
    $region10: #{_pallas_nary_add.1} parent=1 // pred_check
      _
    $region11: #{_pallas_nary_add.1} parent=1 // pred_check_branch
      %35 = sbr.rel (0) target = $region13
    $region12: #{_pallas_nary_add.1} parent=1 // pred_region
      %36 = dma.done [#allocation3], 512
    $region13: #{_pallas_nary_add.1} parent=1 // pred_fallthru
      _
    // Predicated region
    $region14: #{_pallas_nary_add.1} parent=1 // pred_check
      _
    $region15: #{_pallas_nary_add.1} parent=1 // pred_check_branch
      %38 = sbr.rel (0) target = $region17
    $region16: #{_pallas_nary_add.1} parent=1 // pred_region
      %39 = dma.done [#allocation6], 512
    $region17: #{_pallas_nary_add.1} parent=1 // pred_fallthru
      _
    %v40 = vld [vmem:[#allocation2] sm:$0xff]
    %v41 = vld [vmem:[#allocation2 + $0x8] sm:$0xff]
    %v42 = vld [vmem:[#allocation2 + $0x10] sm:$0xff]
    %v43 = vld [vmem:[#allocation2 + $0x18] sm:$0xff]
    %v44 = vld [vmem:[#allocation5] sm:$0xff]
    %v45 = vld [vmem:[#allocation5 + $0x8] sm:$0xff]
    %v46 = vld [vmem:[#allocation5 + $0x10] sm:$0xff]
    %v47 = vld [vmem:[#allocation5 + $0x18] sm:$0xff]
    %v48 = vadd.f32 %v40, %v44
    %v49 = vadd.f32 %v41, %v45
    %v50 = vadd.f32 %v42, %v46
    %v51 = vadd.f32 %v43, %v47
    %52 = vst [vmem:[#allocation7] sm:$0xff] %v48
    %53 = vst [vmem:[#allocation7 + $0x8] sm:$0xff] %v49
    %54 = vst [vmem:[#allocation7 + $0x10] sm:$0xff] %v50
    %55 = vst [vmem:[#allocation7 + $0x18] sm:$0xff] %v51
    // Predicated region
    $region18: #{_pallas_nary_add.1} parent=1 // pred_check
      _
    $region19: #{_pallas_nary_add.1} parent=1 // pred_check_branch
      %57 = sbr.rel (0) target = $region21
    $region20: #{_pallas_nary_add.1} parent=1 // pred_region
      %s59 = ssub.s32 512, 512
      %60 = vsyncadd [#allocation4], %s59
      %s61 = sshll.u32 [#allocation7], 4
      %s62 = int_to_ptr.vmem [resolvable:$true] %s61
      %67 = dma.vmem_to_hbm [thread:$0]  %s62, 512, %s2, [#allocation4], 256, 256, 16
    $region21: #{_pallas_nary_add.1} parent=1 // pred_fallthru
      _
    // Predicated region
    $region22: #{_pallas_nary_add.1} parent=1 // pred_check
      _
    $region23: #{_pallas_nary_add.1} parent=1 // pred_check_branch
      %69 = sbr.rel (0) target = $region25
    $region24: #{_pallas_nary_add.1} parent=1 // pred_region
      %70 = dma.done [#allocation4], 512
    $region25: #{_pallas_nary_add.1} parent=1 // pred_fallthru
      _
    %71 = vsyncpa [#allocation3], 1
    %72 = vsyncpa [#allocation6], 1
    %73 = vsyncpa [#allocation4], 1

</llo_original>
